<compile_context>
chip_gen: v5e
topology: v5e:2x2
jax: 0.10.0
libtpu: 0.0.40
codegen_flags: <defaults>
</compile_context>

<pallas_src>
import numpy as np
import jax
import jax.numpy as jnp
from jax.experimental import pallas as pl
from jax.experimental.pallas import tpu as pltpu


_VMEM_BUDGET = 32 * 1024 * 1024  # explicit scoped-VMEM budget (v6e/v7x default scoped limit)


# ----------------------------------------------------------------------------
# Static 1-D interpolation matrix (align_corners=True), built once in numpy.
# ----------------------------------------------------------------------------
def _up_matrix(n_out: int, n_in: int) -> np.ndarray:
    m = np.zeros((n_out, n_in), np.float32)
    if n_out > 1:
        src = np.arange(n_out, dtype=np.float64) * (n_in - 1) / (n_out - 1)
    else:
        src = np.zeros((1,), np.float64)
    lo = np.clip(np.floor(src).astype(np.int64), 0, n_in - 1)
    hi = np.minimum(lo + 1, n_in - 1)
    frac = (src - lo).astype(np.float32)
    m[np.arange(n_out), lo] += 1.0 - frac
    m[np.arange(n_out), hi] += frac
    return m


# ----------------------------------------------------------------------------
# Pallas kernel.  Grid = (BC // RB, T // TN); both axes "parallel".
#   x_ref   : (RB, SN)        input rows for this (row, column) block; SN = TN * H*W
#   dt_ref  : (TN, RB, H2W2)  T-upsampled, (H,W)-downsampled attention precursor
#   mhw_ref : (H2W2, H*W)     (H ⊗ W) interpolation matrix (grid-invariant, 1-buffered)
#   o_ref   : (RB, SN)        output block (same dtype as x)
# ----------------------------------------------------------------------------
def _local_atten_kernel(x_ref, dt_ref, mhw_ref, o_ref):
    mhw = mhw_ref[...]                       # (H2W2, HW) f32, loaded once per step
    tn = dt_ref.shape[0]                     # static
    hw = mhw_ref.shape[1]                    # static

    for t in range(tn):                      # static unroll over output t-planes
        # (H, W) stage of the separable trilinear upsample for this output plane.
        up = jnp.dot(dt_ref[t], mhw, preferred_element_type=jnp.float32)   # (RB, HW) f32
        # sigmoid via EUP exp + approximate reciprocal (up >= 0 -> denom in (1, 2]).
        mask = pl.reciprocal(1.0 + jnp.exp(-up), approx=True)
        sl = slice(t * hw, (t + 1) * hw)     # static, lane-aligned slice
        xs = x_ref[:, sl].astype(jnp.float32)
        # res2 + res1 * mask  ==  x * (1 + mask)
        o_ref[:, sl] = (xs * (1.0 + mask)).astype(o_ref.dtype)


# ----------------------------------------------------------------------------
# Tile selection: SN = TN*HW lanes (multiple of 128 or full S), RB rows (multiple
# of 8 dividing BC, or all of BC), sized against the explicit VMEM budget.
# ----------------------------------------------------------------------------
def _choose_tiles(BC, T, HW, h2w2, itemsize):
    S = T * HW
    TN = T
    for tn in range(1, T + 1):
        if T % tn:
            continue
        sn = tn * HW
        if sn % 128 != 0 and sn != S:
            continue                         # (8,128) lane constraint
        if sn >= 512 or tn == T:             # target 512-2048 lanes; fallback = full row
            TN = tn
            break
    SN = TN * HW

    def footprint(rb):
        return (2 * rb * SN * 2 * itemsize        # x + out blocks, double-buffered
                + 2 * TN * rb * h2w2 * 4          # dt block, double-buffered
                + h2w2 * HW * 4)                  # mhw, single-buffered

    if BC % 8 == 0:
        RB = min(BC, 128)
        while BC % RB:
            RB -= 8
        while RB > 8 and footprint(RB) > _VMEM_BUDGET // 2:
            RB -= 8
            while BC % RB:
                RB -= 8
    else:
        RB = BC                               # full-dim row block is always legal
    return RB, TN


# ----------------------------------------------------------------------------
# Wrapper: parameter folding, tiny pre-stage, pallas_call.
# ----------------------------------------------------------------------------
def local_atten_3d(x, params):
    B, C, T, H, W = x.shape
    BC = B * C
    HW = H * W
    S = T * HW
    # Two chained k=1 stride-2 depthwise convs == stride-4 selection of the input.
    T2, H2, W2 = (T - 1) // 4 + 1, (H - 1) // 4 + 1, (W - 1) // 4 + 1
    H2W2 = H2 * W2

    # Fold eval-mode BatchNorm into the depthwise-conv per-channel affine.
    eps = 1e-5

    def fold(w, b, gamma, beta, mean, var):
        r = gamma / jnp.sqrt(var + eps)
        return w * r, (b - mean) * r + beta

    s1, h1 = fold(*params["dconv1"])
    s2, h2 = fold(*params["dconv2"])

    # ---- tiny pre-stage: runs on a 1/64-size tensor (pure precompute plumbing) ----
    xds = x[:, :, ::4, ::4, ::4].astype(jnp.float32)             # (B,C,T2,H2,W2)
    bshape = (1, C, 1, 1, 1)
    d = jnp.maximum(xds * s1.reshape(bshape) + h1.reshape(bshape), 0.0)
    d = jnp.maximum(d * s2.reshape(bshape) + h2.reshape(bshape), 0.0)
    d = d.reshape(BC, T2, H2W2)

    # T stage of the separable upsample, laid out (T, BC, H2W2) so the kernel's
    # per-(i, j) block is a plain (TN, RB, H2W2) slab (no in-kernel dynamic slicing).
    mt = jnp.asarray(_up_matrix(T, T2), jnp.float32)             # (T, T2)
    dt = jnp.einsum("tk,rkm->trm", mt, d)                        # (T, BC, H2W2) f32

    # (H ⊗ W) stage matrix (small after going separable), f32 for accuracy.
    mhw = jnp.asarray(np.kron(_up_matrix(H, H2), _up_matrix(W, W2)).T,
                      jnp.float32)                               # (H2W2, HW)

    x2 = x.reshape(BC, S)          # keep the caller's dtype: bf16 in -> bf16 I/O

    RB, TN = _choose_tiles(BC, T, HW, H2W2, x.dtype.itemsize)
    SN = TN * HW
    nI, nJ = BC // RB, T // TN

    ce = pl.CostEstimate(
        flops=int(BC * S * (2 * H2W2 + 8)),
        transcendentals=int(BC * S),
        bytes_accessed=int(2 * BC * S * x.dtype.itemsize
                           + 4 * T * BC * H2W2 + 4 * H2W2 * HW),
    )

    out = pl.pallas_call(
        _local_atten_kernel,
        out_shape=jax.ShapeDtypeStruct((BC, S), x.dtype),
        grid=(nI, nJ),
        in_specs=[
            pl.BlockSpec((RB, SN), lambda i, j: (i, j)),
            pl.BlockSpec((TN, RB, H2W2), lambda i, j: (j, i, 0)),
            pl.BlockSpec((H2W2, HW), lambda i, j: (0, 0),
                         pipeline_mode=pl.Buffered(1)),          # grid-invariant constant
        ],
        out_specs=pl.BlockSpec((RB, SN), lambda i, j: (i, j)),
        compiler_params=pltpu.CompilerParams(
            dimension_semantics=("parallel", "parallel"),
            vmem_limit_bytes=_VMEM_BUDGET),
        cost_estimate=ce,
    )(x2, dt, mhw)

    return out.reshape(B, C, T, H, W)


# ----------------------------------------------------------------------------
# Deterministic parameter init (synthetic, shapes from the module __init__).
# ----------------------------------------------------------------------------
def init_params(C, key):
    ks = jax.random.split(key, 12)

    def branch(k6):
        w = 0.5 * jax.random.normal(k6[0], (C,), jnp.float32)      # conv weight (C,1,1,1,1)
        b = 0.1 * jax.random.normal(k6[1], (C,), jnp.float32)      # conv bias
        gamma = 1.0 + 0.1 * jax.random.normal(k6[2], (C,), jnp.float32)
        beta = 0.1 * jax.random.normal(k6[3], (C,), jnp.float32)
        mean = 0.1 * jax.random.normal(k6[4], (C,), jnp.float32)
        var = jnp.abs(jax.random.normal(k6[5], (C,), jnp.float32)) + 0.5
        return (w, b, gamma, beta, mean, var)

    return {"dconv1": branch(ks[0:6]), "dconv2": branch(ks[6:12])}


# ----------------------------------------------------------------------------
# Pure numpy reference (chained form, independent of the kernel formulation).
# ----------------------------------------------------------------------------
def _np_upsample_axis(x, axis, n_out):
    n_in = x.shape[axis]
    if n_out > 1:
        src = np.arange(n_out, dtype=np.float64) * (n_in - 1) / (n_out - 1)
    else:
        src = np.zeros((1,), np.float64)
    lo = np.clip(np.floor(src).astype(np.int64), 0, n_in - 1)
    hi = np.minimum(lo + 1, n_in - 1)
    frac = src - lo
    shape = [1] * x.ndim
    shape[axis] = n_out
    frac = frac.reshape(shape)
    return np.take(x, lo, axis=axis) * (1.0 - frac) + np.take(x, hi, axis=axis) * frac


def np_reference(x, params):
    eps = 1e-5

    def fold(w, b, gamma, beta, mean, var):
        w, b, gamma, beta, mean, var = [np.asarray(a, np.float64)
                                        for a in (w, b, gamma, beta, mean, var)]
        r = gamma / np.sqrt(var + eps)
        return ((w * r)[None, :, None, None, None],
                (((b - mean) * r) + beta)[None, :, None, None, None])

    s1, h1 = fold(*params["dconv1"])
    s2, h2 = fold(*params["dconv2"])
    x = np.asarray(x, np.float64)
    _, _, T, H, W = x.shape
    d = np.maximum(x[:, :, ::2, ::2, ::2] * s1 + h1, 0.0)
    d = np.maximum(d[:, :, ::2, ::2, ::2] * s2 + h2, 0.0)
    up = d
    for axis, n in zip((2, 3, 4), (T, H, W)):
        up = _np_upsample_axis(up, axis, n)
    mask = 1.0 / (1.0 + np.exp(-up))
    return x + x * mask


if __name__ == "__main__":
    key = jax.random.PRNGKey(0)
    kx, kp, kx2, kp2 = jax.random.split(key, 4)

    # --- primary shape (f32 I/O): grid (1, 4), 512-lane column blocks ---
    B, C, T, H, W = 2, 4, 8, 16, 16
    x = jax.random.normal(kx, (B, C, T, H, W), jnp.float32)
    params = init_params(C, kp)
    out = jax.block_until_ready(local_atten_3d(x, params))
    ref = np_reference(np.asarray(x), jax.tree_util.tree_map(np.asarray, params))
    np.testing.assert_allclose(np.asarray(out), ref, rtol=2e-3, atol=2e-3)

    # --- odd/small shape exercising the full-row / non-multiple-of-8 fallbacks ---
    x_b = jax.random.normal(kx2, (1, 3, 4, 8, 16), jnp.float32)
    params_b = init_params(3, kp2)
    out_b = jax.block_until_ready(local_atten_3d(x_b, params_b))
    ref_b = np_reference(np.asarray(x_b), jax.tree_util.tree_map(np.asarray, params_b))
    np.testing.assert_allclose(np.asarray(out_b), ref_b, rtol=2e-3, atol=2e-3)

    # --- bf16 I/O path: no f32 upcast in the wrapper, bf16 in -> bf16 out ---
    xb = x.astype(jnp.bfloat16)
    out_bf = jax.block_until_ready(local_atten_3d(xb, params))
    ref_bf = np_reference(np.asarray(xb.astype(jnp.float32)),
                          jax.tree_util.tree_map(np.asarray, params))
    np.testing.assert_allclose(np.asarray(out_bf.astype(jnp.float32)), ref_bf,
                               rtol=2e-2, atol=2e-2)

    print("KERNEL_OK")
</pallas_src>

<mosaic_0001>
module attributes {stable_mosaic.version = 11 : i64} {
  func.func @_local_atten_kernel(%arg0: i32, %arg1: i32, %arg2: memref<8x512xf32, #tpu.memory_space<vmem>>, %arg3: memref<2x8x16xf32, #tpu.memory_space<vmem>>, %arg4: memref<16x256xf32, #tpu.memory_space<vmem>>, %arg5: memref<8x512xf32, #tpu.memory_space<vmem>>) attributes {dimension_semantics = [#tpu.dimension_semantics<parallel>, #tpu.dimension_semantics<parallel>], iteration_bounds = array<i64: 1, 4>, scalar_prefetch = 0 : i64, scratch_operands = 0 : i64, tpu.core_type = #tpu.core_type<tc>, window_params = [{transform_indices = @transform_0, window_bounds = array<i64: 8, 512>}, {transform_indices = @transform_1, window_bounds = array<i64: 2, 8, 16>}, {pipeline_mode = #tpu.pipeline_mode<synchronous>, transform_indices = @transform_2, window_bounds = array<i64: 16, 256>}, {transform_indices = @transform_3, window_bounds = array<i64: 8, 512>}]} {
    %c0 = arith.constant 0 : index
    %c0_0 = arith.constant 0 : index
    %0 = vector.load %arg4[%c0, %c0_0] : memref<16x256xf32, #tpu.memory_space<vmem>>, vector<16x256xf32>
    %c0_1 = arith.constant 0 : index
    %c0_2 = arith.constant 0 : index
    %c0_3 = arith.constant 0 : index
    %1 = vector.load %arg3[%c0_1, %c0_2, %c0_3] : memref<2x8x16xf32, #tpu.memory_space<vmem>>, vector<1x8x16xf32>
    %2 = vector.shape_cast %1 : vector<1x8x16xf32> to vector<8x16xf32>
    %cst = arith.constant dense<0.000000e+00> : vector<8x256xf32>
    %3 = tpu.matmul %2, %0, %cst {dimension_numbers = #tpu.dot_dimension_numbers<[1], [0], [0], [1], [0, 0, 1, 1], [], []>} : vector<8x16xf32>, vector<16x256xf32>, vector<8x256xf32> -> vector<8x256xf32>
    %cst_4 = arith.constant 0.000000e+00 : f32
    %4 = vector.broadcast %cst_4 : f32 to vector<8x256xf32>
    %5 = arith.subf %4, %3 : vector<8x256xf32>
    %6 = math.exp %5 : vector<8x256xf32>
    %cst_5 = arith.constant 1.000000e+00 : f32
    %7 = vector.broadcast %cst_5 : f32 to vector<8x256xf32>
    %8 = arith.addf %7, %6 : vector<8x256xf32>
    %9 = tpu.reciprocal %8 {approx = true} : vector<8x256xf32> -> vector<8x256xf32>
    %c0_6 = arith.constant 0 : index
    %c0_7 = arith.constant 0 : index
    %10 = vector.load %arg2[%c0_6, %c0_7] : memref<8x512xf32, #tpu.memory_space<vmem>>, vector<8x256xf32>
    %cst_8 = arith.constant 1.000000e+00 : f32
    %11 = vector.broadcast %cst_8 : f32 to vector<8x256xf32>
    %12 = arith.addf %11, %9 : vector<8x256xf32>
    %13 = arith.mulf %10, %12 : vector<8x256xf32>
    %c0_9 = arith.constant 0 : index
    %c0_10 = arith.constant 0 : index
    %14 = vector.load %arg5[%c0_9, %c0_10] : memref<8x512xf32, #tpu.memory_space<vmem>>, vector<8x256xf32>
    tpu.vector_store %arg5[%c0_9, %c0_10], %13 {strides = array<i32>} : memref<8x512xf32, #tpu.memory_space<vmem>>, vector<8x256xf32>,
    %c1 = arith.constant 1 : index
    %c0_11 = arith.constant 0 : index
    %c0_12 = arith.constant 0 : index
    %15 = vector.load %arg3[%c1, %c0_11, %c0_12] : memref<2x8x16xf32, #tpu.memory_space<vmem>>, vector<1x8x16xf32>
    %16 = vector.shape_cast %15 : vector<1x8x16xf32> to vector<8x16xf32>
    %cst_13 = arith.constant dense<0.000000e+00> : vector<8x256xf32>
    %17 = tpu.matmul %16, %0, %cst_13 {dimension_numbers = #tpu.dot_dimension_numbers<[1], [0], [0], [1], [0, 0, 1, 1], [], []>} : vector<8x16xf32>, vector<16x256xf32>, vector<8x256xf32> -> vector<8x256xf32>
    %cst_14 = arith.constant 0.000000e+00 : f32
    %18 = vector.broadcast %cst_14 : f32 to vector<8x256xf32>
    %19 = arith.subf %18, %17 : vector<8x256xf32>
    %20 = math.exp %19 : vector<8x256xf32>
    %cst_15 = arith.constant 1.000000e+00 : f32
    %21 = vector.broadcast %cst_15 : f32 to vector<8x256xf32>
    %22 = arith.addf %21, %20 : vector<8x256xf32>
    %23 = tpu.reciprocal %22 {approx = true} : vector<8x256xf32> -> vector<8x256xf32>
    %c0_16 = arith.constant 0 : index
    %c256 = arith.constant 256 : index
    %24 = vector.load %arg2[%c0_16, %c256] : memref<8x512xf32, #tpu.memory_space<vmem>>, vector<8x256xf32>
    %cst_17 = arith.constant 1.000000e+00 : f32
    %25 = vector.broadcast %cst_17 : f32 to vector<8x256xf32>
    %26 = arith.addf %25, %23 : vector<8x256xf32>
    %27 = arith.mulf %24, %26 : vector<8x256xf32>
    %c0_18 = arith.constant 0 : index
    %c256_19 = arith.constant 256 : index
    %28 = vector.load %arg5[%c0_18, %c256_19] : memref<8x512xf32, #tpu.memory_space<vmem>>, vector<8x256xf32>
    tpu.vector_store %arg5[%c0_18, %c256_19], %27 {strides = array<i32>} : memref<8x512xf32, #tpu.memory_space<vmem>>, vector<8x256xf32>,
    return
  }
  func.func @transform_0(%arg0: i32, %arg1: i32) -> (i32, i32) {
    %c0_i32 = arith.constant 0 : i32
    return %arg0, %arg1 : i32, i32
  }
  func.func @transform_1(%arg0: i32, %arg1: i32) -> (i32, i32, i32) {
    %c0_i32 = arith.constant 0 : i32
    %c0_i32_0 = arith.constant 0 : i32
    return %arg1, %arg0, %c0_i32 : i32, i32, i32
  }
  func.func @transform_2(%arg0: i32, %arg1: i32) -> (i32, i32) {
    %c0_i32 = arith.constant 0 : i32
    %c0_i32_0 = arith.constant 0 : i32
    %c0_i32_1 = arith.constant 0 : i32
    return %c0_i32, %c0_i32_0 : i32, i32
  }
  func.func @transform_3(%arg0: i32, %arg1: i32) -> (i32, i32) {
    %c0_i32 = arith.constant 0 : i32
    return %arg0, %arg1 : i32, i32
  }
}

</mosaic_0001>

<llo_original>
// kernel: tpu_custom_call.1
$region0: #{tpu_custom_call.1}
  #allocation0 [shape = 'u32[]', space=smem, size = 0x4, offset = 0x4, fixed_abs, tag = 'smem constant byte address 0x4 - core index']
  #allocation1 [shape = 'u32[72,128]{1,0:T(1,128)}', space=vmem, size = 0x9000, scoped, tag = 'internal scratch']
  %s0 = inlined_call_operand.hbm [shape: f32[8,2048], index: 0, kind: input, shape index: {}]
  %s1 = inlined_call_operand.hbm [shape: f32[8,8,16], index: 1, kind: input, shape index: {}]
  %s2 = inlined_call_operand.hbm [shape: f32[16,256], index: 2, kind: input, shape index: {}]
  %s3 = inlined_call_operand.hbm [shape: f32[8,2048], index: 3, kind: output, shape index: {}]
  %s4 = sld [smem:[#allocation0]]
  $region57: #{tpu_custom_call.1} parent=0
    _
  %s6 = ssub.s32 1, %s4
  %s7 = scalar_select 0, %s6, %s4
  $region1: #{tpu_custom_call.1} parent=0
    #allocation2 [shape = 'u8[32768]{0}', space=vmem, size = 0x8000, scoped, tag = 'input window, operand 0']
    #allocation3 [shape = 's32[2]{0}', space=sflag, size = 0x8, scoped, tag = 'scoped memory for tpu_custom_call.1']
    #allocation4 [shape = 's32[2]{0}', space=sflag, size = 0x8, scoped, tag = 'scoped memory for tpu_custom_call.1']
    #allocation5 [shape = 'u8[16384]{0}', space=vmem, size = 0x4000, scoped, tag = 'input window, operand 1']
    #allocation6 [shape = 's32[2]{0}', space=sflag, size = 0x8, scoped, tag = 'scoped memory for tpu_custom_call.1']
    #allocation7 [shape = 'u8[16384]{0}', space=vmem, size = 0x4000, scoped, tag = 'input window, operand 2, single buffered']
    #allocation8 [shape = 'u8[32768]{0}', space=vmem, size = 0x8000, scoped, tag = 'output window, operand 0']
    %8 = vsyncpa [#allocation3], 0
    %s9 = scalar_lea.sflag [#allocation3], 1
    %10 = vsyncpa %s9, 0
    %11 = vsyncpa [#allocation6], 0
    %s12 = scalar_lea.sflag [#allocation6], 1
    %13 = vsyncpa %s12, 0
    %14 = vsyncpa [#allocation4], 0
    %s15 = scalar_lea.sflag [#allocation4], 1
    %16 = vsyncpa %s15, 0
    loop: start=0, step=1, limit=6
    $region2: #{tpu_custom_call.1} parent=1 // loop_pre_header
      _
    $region3: #{tpu_custom_call.1} parent=1 // loop_header
      %s18 = sphi 0, %s22
      %p19 = scmp.ge.s32.totalorder %s18, 6
      %s25 = sphi 0, %s37
      %s26 = sphi 0, %s33
      %s27 = sphi 0, %s25
      %s28 = sphi 0, %s26
      %s29 = sphi 0, %s27
      %s30 = sphi 0, %s28
      %s42 = sphi 0, %s44
      %s45 = sphi 0, %s42
      %s46 = sphi 0, %s45
      %s62 = sphi 0, %s46
      %s70 = sphi 0, %s72
      %s73 = sphi 0, %s70
      %s74 = sphi 0, %s73
      %s90 = sphi 0, %s74
      %s94 = sphi 0, %s94
      %s96 = sphi 0, %s94
      %s97 = sphi 0, %s96
      %s111 = sphi 0, %s97
      %s119 = sphi 0, %s121
      %s122 = sphi 0, %s119
      %s123 = sphi 0, %s122
      %s139 = sphi 0, %s123
    $region4: #{tpu_custom_call.1} parent=1 // loop_header_branch
      %21 = sbr.rel (%p19) target = $region8
    $region5: #{tpu_custom_call.1} parent=1 // loop_body
      %s23 = ssub.s32 %s18, 1
      %s24 = ssub.s32 %s18, 2
      %s31 = sadd.s32 1, %s26
      %p32 = scmp.ge.s32.totalorder %s31, 4
      %s33 = scalar_select %p32, 0, %s31
      %s34 = sadd.s32 1, %s25
      %s35 = scalar_select %p32, %s34, %s25
      %p36 = scmp.ge.s32.totalorder %s35, 1
      %s37 = scalar_select %p36, 0, %s35
      %s38 = ssub.s32 %s25, %s37
      %s39 = ssub.s32 %s26, %s33
      %s40 = sor.u32 %s38, %s39
      %p41 = scmp.eq.s32.totalorder %s40, 0
      %s43 = sadd.s32 %s42, 1
      %s44 = scalar_select %p41, %s42, %s43
      %p47 = pneg %p41
      %p48 = scmp.eq.s32.totalorder %s18, 3
      %p49 = por %p47, %p48
      %p50 = scmp.ne.s32.totalorder %s42, %s45
      %p51 = scmp.eq.s32.totalorder %s18, 0
      %p52 = por %p50, %p51
      %p53 = scmp.ne.s32.totalorder %s42, %s45
      %p54 = scmp.eq.s32.totalorder %s23, 3
      %p55 = por %p53, %p54
      %p56 = scmp.ne.s32.totalorder %s45, %s46
      %p57 = scmp.eq.s32.totalorder %s23, 0
      %p58 = por %p56, %p57
      %p59 = scmp.ne.s32.totalorder %s45, %s46
      %p60 = scmp.eq.s32.totalorder %s24, 3
      %p61 = por %p59, %p60
      %p63 = scmp.ne.s32.totalorder %s46, %s62
      %p64 = scmp.eq.s32.totalorder %s24, 0
      %p65 = por %p63, %p64
      %s66 = ssub.s32 %s26, %s33
      %s67 = ssub.s32 %s25, %s37
      %s68 = sor.u32 %s66, %s67
      %p69 = scmp.eq.s32.totalorder %s68, 0
      %s71 = sadd.s32 %s70, 1
      %s72 = scalar_select %p69, %s70, %s71
      %p75 = pneg %p69
      %p76 = scmp.eq.s32.totalorder %s18, 3
      %p77 = por %p75, %p76
      %p78 = scmp.ne.s32.totalorder %s70, %s73
      %p79 = scmp.eq.s32.totalorder %s18, 0
      %p80 = por %p78, %p79
      %p81 = scmp.ne.s32.totalorder %s70, %s73
      %p82 = scmp.eq.s32.totalorder %s23, 3
      %p83 = por %p81, %p82
      %p84 = scmp.ne.s32.totalorder %s73, %s74
      %p85 = scmp.eq.s32.totalorder %s23, 0
      %p86 = por %p84, %p85
      %p87 = scmp.ne.s32.totalorder %s73, %s74
      %p88 = scmp.eq.s32.totalorder %s24, 3
      %p89 = por %p87, %p88
      %p91 = scmp.ne.s32.totalorder %s74, %s90
      %p92 = scmp.eq.s32.totalorder %s24, 0
      %p93 = por %p91, %p92
      %s95 = sadd.s32 %s94, 1
      %p98 = scmp.eq.s32.totalorder %s18, 3
      %p99 = scmp.ne.s32.totalorder %s94, %s96
      %p100 = scmp.eq.s32.totalorder %s18, 0
      %p101 = por %p99, %p100
      %p102 = scmp.ne.s32.totalorder %s94, %s96
      %p103 = scmp.eq.s32.totalorder %s23, 3
      %p104 = por %p102, %p103
      %p105 = scmp.ne.s32.totalorder %s96, %s97
      %p106 = scmp.eq.s32.totalorder %s23, 0
      %p107 = por %p105, %p106
      %p108 = scmp.ne.s32.totalorder %s96, %s97
      %p109 = scmp.eq.s32.totalorder %s24, 3
      %p110 = por %p108, %p109
      %p112 = scmp.ne.s32.totalorder %s97, %s111
      %p113 = scmp.eq.s32.totalorder %s24, 0
      %p114 = por %p112, %p113
      %s115 = ssub.s32 %s25, %s37
      %s116 = ssub.s32 %s26, %s33
      %s117 = sor.u32 %s115, %s116
      %p118 = scmp.eq.s32.totalorder %s117, 0
      %s120 = sadd.s32 %s119, 1
      %s121 = scalar_select %p118, %s119, %s120
      %p124 = pneg %p118
      %p125 = scmp.eq.s32.totalorder %s18, 3
      %p126 = por %p124, %p125
      %p127 = scmp.ne.s32.totalorder %s119, %s122
      %p128 = scmp.eq.s32.totalorder %s18, 0
      %p129 = por %p127, %p128
      %p130 = scmp.ne.s32.totalorder %s119, %s122
      %p131 = scmp.eq.s32.totalorder %s23, 3
      %p132 = por %p130, %p131
      %p133 = scmp.ne.s32.totalorder %s122, %s123
      %p134 = scmp.eq.s32.totalorder %s23, 0
      %p135 = por %p133, %p134
      %p136 = scmp.ne.s32.totalorder %s122, %s123
      %p137 = scmp.eq.s32.totalorder %s24, 3
      %p138 = por %p136, %p137
      %p140 = scmp.ne.s32.totalorder %s123, %s139
      %p141 = scmp.eq.s32.totalorder %s24, 0
      %p142 = por %p140, %p141
      %p143 = scmp.le.s32.totalorder 1, %s18
      %p144 = scmp.lt.s32.totalorder %s18, 5
      %p145 = pnand %p143, %p144
      %p146 = pneg %p145
      // Predicated region
      $region9: #{tpu_custom_call.1} parent=5 // pred_check
        _
      $region10: #{tpu_custom_call.1} parent=5 // pred_check_branch
        %148 = sbr.rel (%p145) target = $region12
      $region11: #{tpu_custom_call.1} parent=5 // pred_region
        %s149 = ssub.s32 %s18, 1
        // Predicated region
        $region13: #{tpu_custom_call.1} parent=11 // pred_check
          %p150 = pneg %p107
        $region14: #{tpu_custom_call.1} parent=11 // pred_check_branch
          %152 = sbr.rel (%p150) target = $region16
        $region15: #{tpu_custom_call.1} parent=11 // pred_region
          %154 = vsyncadd [#allocation6], 0
          %s155 = sshll.u32 %s2, 4
          %s156 = int_to_ptr.hbm [resolvable:$true] %s155
          %s157 = sshll.u32 [#allocation7], 4
          %s158 = int_to_ptr.vmem [resolvable:$true] %s157
          %163 = dma.hbm_to_vmem [thread:$0]  %s156, 512, %s158, [#allocation6], 256, 256, 16
        $region16: #{tpu_custom_call.1} parent=11 // pred_fallthru
          _
      $region12: #{tpu_custom_call.1} parent=5 // pred_fallthru
        _
      %p164 = scmp.lt.s32.totalorder %s18, 4
      // Predicated region
      $region17: #{tpu_custom_call.1} parent=5 // pred_check
        %p165 = pneg %p164
      $region18: #{tpu_custom_call.1} parent=5 // pred_check_branch
        %167 = sbr.rel (%p165) target = $region20
      $region19: #{tpu_custom_call.1} parent=5 // pred_region
        // Predicated region
        $region21: #{tpu_custom_call.1} parent=19 // pred_check
          %p168 = pneg %p52
        $region22: #{tpu_custom_call.1} parent=19 // pred_check_branch
          %170 = sbr.rel (%p168) target = $region24
        $region23: #{tpu_custom_call.1} parent=19 // pred_region
          %s171 = sand.u32 %s42, 1
          %s172 = scalar_lea.sflag [#allocation3], %s171
          %s173 = sand.u32 %s42, 1
          %s174 = smul.addr %s173, 32
          %s175 = scalar_lea.vmem [#allocation2], %s174
          %s176 = smul.u32 4, %s26
          %178 = vsyncadd %s172, 0
          %s179 = smul.addr %s25, 16
          %s180 = sadd.s32 %s176, %s179
          %s181 = smul.addr %s180, 8
          %s182 = scalar_lea.hbm %s0, %s181
          %s184 = sshll.u32 %s182, 4
          %s185 = int_to_ptr.hbm [resolvable:$true] %s184
          %s186 = sshll.u32 %s175, 4
          %s187 = int_to_ptr.vmem [resolvable:$true] %s186
          %189 = dma.hbm_to_vmem [thread:$0]  %s185, 512, %s187, %s172
        $region24: #{tpu_custom_call.1} parent=19 // pred_fallthru
          _
        // Predicated region
        $region25: #{tpu_custom_call.1} parent=19 // pred_check
          %p190 = pneg %p80
        $region26: #{tpu_custom_call.1} parent=19 // pred_check_branch
          %192 = sbr.rel (%p190) target = $region28
        $region27: #{tpu_custom_call.1} parent=19 // pred_region
          %s193 = sand.u32 %s18, 1
          %s194 = scalar_lea.sflag [#allocation6], %s193
          %s195 = sand.u32 %s70, 1
          %s196 = smul.addr %s195, 16
          %s197 = scalar_lea.vmem [#allocation5], %s196
          %s198 = smul.u32 2, %s26
          %200 = vsyncadd %s194, 0
          %s201 = sadd.s32 %s25, %s198
          %s202 = smul.addr %s201, 8
          %s203 = scalar_lea.hbm %s1, %s202
          %s204 = sshll.u32 %s203, 4
          %s205 = int_to_ptr.hbm [resolvable:$true] %s204
          %s206 = sshll.u32 %s197, 4
          %s207 = int_to_ptr.vmem [resolvable:$true] %s206
          %212 = dma.hbm_to_vmem [thread:$0]  %s205, 256, %s207, %s194, 128, 128, 8
        $region28: #{tpu_custom_call.1} parent=19 // pred_fallthru
          _
      $region20: #{tpu_custom_call.1} parent=5 // pred_fallthru
        _
      %p213 = scmp.le.s32.totalorder 1, %s18
      %p214 = scmp.lt.s32.totalorder %s18, 5
      %p215 = pnand %p213, %p214
      %p216 = pneg %p215
      // Predicated region
      $region29: #{tpu_custom_call.1} parent=5 // pred_check
        _
      $region30: #{tpu_custom_call.1} parent=5 // pred_check_branch
        %218 = sbr.rel (%p215) target = $region32
      $region31: #{tpu_custom_call.1} parent=5 // pred_region
        %s219 = ssub.s32 %s18, 1
        %s220 = sand.u32 %s45, 1
        %s221 = scalar_lea.sflag [#allocation3], %s220
        %s222 = sand.u32 %s45, 1
        %s223 = smul.addr %s222, 32
        %s224 = scalar_lea.vmem [#allocation2], %s223
        // Predicated region
        $region33: #{tpu_custom_call.1} parent=31 // pred_check
          %p225 = pneg %p58
        $region34: #{tpu_custom_call.1} parent=31 // pred_check_branch
          %227 = sbr.rel (%p225) target = $region36
        $region35: #{tpu_custom_call.1} parent=31 // pred_region
          %229 = dma.done %s221, 512
        $region36: #{tpu_custom_call.1} parent=31 // pred_fallthru
          _
        %s230 = sand.u32 %s23, 1
        %s231 = scalar_lea.sflag [#allocation6], %s230
        %s232 = sand.u32 %s73, 1
        %s233 = smul.addr %s232, 16
        %s234 = scalar_lea.vmem [#allocation5], %s233
        // Predicated region
        $region37: #{tpu_custom_call.1} parent=31 // pred_check
          %p235 = pneg %p86
        $region38: #{tpu_custom_call.1} parent=31 // pred_check_branch
          %237 = sbr.rel (%p235) target = $region40
        $region39: #{tpu_custom_call.1} parent=31 // pred_region
          %239 = dma.done %s231, 256
        $region40: #{tpu_custom_call.1} parent=31 // pred_fallthru
          _
        // Predicated region
        $region41: #{tpu_custom_call.1} parent=31 // pred_check
          %p240 = pneg %p107
        $region42: #{tpu_custom_call.1} parent=31 // pred_check_branch
          %242 = sbr.rel (%p240) target = $region44
        $region43: #{tpu_custom_call.1} parent=31 // pred_region
          %244 = dma.done [#allocation6], 512
        $region44: #{tpu_custom_call.1} parent=31 // pred_fallthru
          _
        %s245 = sand.u32 %s45, 1
        %s246 = scalar_lea.sflag [#allocation3], %s245
        %s247 = sand.u32 %s45, 1
        %s248 = smul.addr %s247, 32
        %s249 = scalar_lea.vmem [#allocation2], %s248
        %p250 = pneg %p58
        %p251 = pneg %p55
        %s252 = sand.u32 %s23, 1
        %s253 = scalar_lea.sflag [#allocation6], %s252
        %s254 = sand.u32 %s73, 1
        %s255 = smul.addr %s254, 16
        %s256 = scalar_lea.vmem [#allocation5], %s255
        %p257 = pneg %p86
        %p258 = pneg %p83
        %p259 = pneg %p107
        %p260 = pneg %p104
        %p261 = pneg %p135
        %p262 = pneg %p132
        %s263 = sand.u32 %s122, 1
        %s264 = scalar_lea.sflag [#allocation4], %s263
        %s265 = sand.u32 %s122, 1
        %s266 = smul.addr %s265, 32
        %s267 = scalar_lea.vmem [#allocation8], %s266
        %s268 = smul.u32 4, %s28
        %s269 = smul.u32 2, %s28
        %s270 = smul.u32 4, %s28
        %v271 = vld [vmem:[#allocation7] sm:$0xff]
        %v272 = vld [vmem:[#allocation7 + $0x8] sm:$0xff]
        %v273 = vld [vmem:[#allocation7 + $0x10] sm:$0xff]
        %v274 = vld [vmem:[#allocation7 + $0x18] sm:$0xff]
        %v275 = vld [vmem:[%s234] sm:$0xff]
        %vm276 = vcmask 130048
        %v278 = vsel %vm276, %v275, 0
        %280 = vmatpush.msra.mxu0 0.0
        %281 = vmatpush.msra.mxu0 0.0
        %282 = vmatpush.msra.mxu0 0.0
        %283 = vmatpush.msra.mxu0 0.0
        %284 = vmatpush.msra.mxu0 0.0
        %285 = vmatpush.msra.mxu0 0.0
        %286 = vmatpush.msra.mxu0 0.0
        %287 = vmatpush.msra.mxu0 0.0
        %288 = vmatpush.msra.mxu0 0.0
        %289 = vmatpush.msra.mxu0 0.0
        %290 = vmatpush.msra.mxu0 0.0
        %291 = vmatpush.msra.mxu0 0.0
        %292 = vmatpush.msra.mxu0 0.0
        %293 = vmatpush.msra.mxu0 0.0
        %294 = vmatpush.msra.mxu0 %v273
        %295 = vmatpush.msra.mxu0 %v271
        %296 = vmatmul.f32.gmra.mxu0 %v278
        %v297 = vpop.f32.mrf.mxu0
        %v298 = vadd.f32 0.0, %v297
        %299 = vdwg.mxu0
        %300 = vmatpush.msra.mxu0 0.0
        %301 = vmatpush.msra.mxu0 0.0
        %302 = vmatpush.msra.mxu0 0.0
        %303 = vmatpush.msra.mxu0 0.0
        %304 = vmatpush.msra.mxu0 0.0
        %305 = vmatpush.msra.mxu0 0.0
        %306 = vmatpush.msra.mxu0 0.0
        %307 = vmatpush.msra.mxu0 0.0
        %308 = vmatpush.msra.mxu0 0.0
        %309 = vmatpush.msra.mxu0 0.0
        %310 = vmatpush.msra.mxu0 0.0
        %311 = vmatpush.msra.mxu0 0.0
        %312 = vmatpush.msra.mxu0 0.0
        %313 = vmatpush.msra.mxu0 0.0
        %314 = vmatpush.msra.mxu0 %v274
        %315 = vmatpush.msra.mxu0 %v272
        %316 = vmatmul.f32.gmra.mxu0 %v278
        %v317 = vpop.f32.mrf.mxu0
        %v318 = vadd.f32 0.0, %v317
        %319 = vdwg.mxu0
        %v320 = vsub.f32 0.0, %v298
        %v321 = vsub.f32 0.0, %v318
        %v322 = vmul.f32 %v320, 1.442695
        %v323 = vpow.pop %v322
        %v324 = vmul.f32 %v321, 1.442695
        %v325 = vpow.pop %v324
        %v326 = vadd.f32 %v323, 1.0
        %v327 = vadd.f32 %v325, 1.0
        %v328 = vrcp.pop %v326
        %v329 = vrcp.pop %v327
        %v330 = vld [vmem:[%s224] sm:$0xff]
        %v331 = vld [vmem:[%s224 + $0x8] sm:$0xff]
        %v332 = vadd.f32 %v328, 1.0
        %v333 = vadd.f32 %v329, 1.0
        %v334 = vmul.f32 %v330, %v332
        %v335 = vmul.f32 %v331, %v333
        %336 = vst [vmem:[%s267] sm:$0xff] %v334
        %337 = vst [vmem:[%s267 + $0x8] sm:$0xff] %v335
        %s338 = scalar_lea.vmem %s234, 8 [#allocation5]
        %v339 = vld [vmem:[%s338] sm:$0xff]
        %v341 = vsel %vm276, %v339, 0
        %343 = vmatpush.msra.mxu0 0.0
        %344 = vmatpush.msra.mxu0 0.0
        %345 = vmatpush.msra.mxu0 0.0
        %346 = vmatpush.msra.mxu0 0.0
        %347 = vmatpush.msra.mxu0 0.0
        %348 = vmatpush.msra.mxu0 0.0
        %349 = vmatpush.msra.mxu0 0.0
        %350 = vmatpush.msra.mxu0 0.0
        %351 = vmatpush.msra.mxu0 0.0
        %352 = vmatpush.msra.mxu0 0.0
        %353 = vmatpush.msra.mxu0 0.0
        %354 = vmatpush.msra.mxu0 0.0
        %355 = vmatpush.msra.mxu0 0.0
        %356 = vmatpush.msra.mxu0 0.0
        %357 = vmatpush.msra.mxu0 %v273
        %358 = vmatpush.msra.mxu0 %v271
        %359 = vmatmul.f32.gmra.mxu0 %v341
        %v360 = vpop.f32.mrf.mxu0
        %v361 = vadd.f32 0.0, %v360
        %362 = vdwg.mxu0
        %363 = vmatpush.msra.mxu0 0.0
        %364 = vmatpush.msra.mxu0 0.0
        %365 = vmatpush.msra.mxu0 0.0
        %366 = vmatpush.msra.mxu0 0.0
        %367 = vmatpush.msra.mxu0 0.0
        %368 = vmatpush.msra.mxu0 0.0
        %369 = vmatpush.msra.mxu0 0.0
        %370 = vmatpush.msra.mxu0 0.0
        %371 = vmatpush.msra.mxu0 0.0
        %372 = vmatpush.msra.mxu0 0.0
        %373 = vmatpush.msra.mxu0 0.0
        %374 = vmatpush.msra.mxu0 0.0
        %375 = vmatpush.msra.mxu0 0.0
        %376 = vmatpush.msra.mxu0 0.0
        %377 = vmatpush.msra.mxu0 %v274
        %378 = vmatpush.msra.mxu0 %v272
        %379 = vmatmul.f32.gmra.mxu0 %v341
        %v380 = vpop.f32.mrf.mxu0
        %v381 = vadd.f32 0.0, %v380
        %382 = vdwg.mxu0
        %v383 = vsub.f32 0.0, %v361
        %v384 = vsub.f32 0.0, %v381
        %v385 = vmul.f32 %v383, 1.442695
        %v386 = vpow.pop %v385
        %v387 = vmul.f32 %v384, 1.442695
        %v388 = vpow.pop %v387
        %v389 = vadd.f32 %v386, 1.0
        %v390 = vadd.f32 %v388, 1.0
        %v391 = vrcp.pop %v389
        %v392 = vrcp.pop %v390
        %v393 = vld [vmem:[%s224 + $0x10] sm:$0xff]
        %v394 = vld [vmem:[%s224 + $0x18] sm:$0xff]
        %v395 = vadd.f32 %v391, 1.0
        %v396 = vadd.f32 %v392, 1.0
        %v397 = vmul.f32 %v393, %v395
        %v398 = vmul.f32 %v394, %v396
        %399 = vst [vmem:[%s267 + $0x10] sm:$0xff] %v397
        %400 = vst [vmem:[%s267 + $0x18] sm:$0xff] %v398
        %s401 = sand.u32 %s122, 1
        %s402 = scalar_lea.sflag [#allocation4], %s401
        %s403 = sand.u32 %s122, 1
        %s404 = smul.addr %s403, 32
        %s405 = scalar_lea.vmem [#allocation8], %s404
        // Predicated region
        $region45: #{tpu_custom_call.1} parent=31 // pred_check
          %p406 = pneg %p132
        $region46: #{tpu_custom_call.1} parent=31 // pred_check_branch
          %408 = sbr.rel (%p406) target = $region48
        $region47: #{tpu_custom_call.1} parent=31 // pred_region
          %s409 = smul.u32 4, %s28
          %411 = vsyncadd %s402, 0
          %s412 = smul.addr %s27, 16
          %s413 = sadd.s32 %s409, %s412
          %s414 = smul.addr %s413, 8
          %s415 = scalar_lea.hbm %s3, %s414
          %s417 = sshll.u32 %s405, 4
          %s418 = int_to_ptr.vmem [resolvable:$true] %s417
          %s419 = sshll.u32 %s415, 4
          %s420 = int_to_ptr.hbm [resolvable:$true] %s419
          %422 = dma.vmem_to_hbm [thread:$0]  %s418, 512, %s420, %s402
        $region48: #{tpu_custom_call.1} parent=31 // pred_fallthru
          _
      $region32: #{tpu_custom_call.1} parent=5 // pred_fallthru
        _
      %p423 = scmp.le.s32.totalorder 2, %s18
      // Predicated region
      $region49: #{tpu_custom_call.1} parent=5 // pred_check
        %p424 = pneg %p423
      $region50: #{tpu_custom_call.1} parent=5 // pred_check_branch
        %426 = sbr.rel (%p424) target = $region52
      $region51: #{tpu_custom_call.1} parent=5 // pred_region
        %s427 = ssub.s32 %s18, 2
        // Predicated region
        $region53: #{tpu_custom_call.1} parent=51 // pred_check
          %p428 = pneg %p138
        $region54: #{tpu_custom_call.1} parent=51 // pred_check_branch
          %430 = sbr.rel (%p428) target = $region56
        $region55: #{tpu_custom_call.1} parent=51 // pred_region
          %s431 = sand.u32 %s123, 1
          %s432 = scalar_lea.sflag [#allocation4], %s431
          %s433 = sand.u32 %s123, 1
          %s434 = smul.addr %s433, 32
          %s435 = scalar_lea.vmem [#allocation8], %s434
          %437 = dma.done %s432, 512
        $region56: #{tpu_custom_call.1} parent=51 // pred_fallthru
          _
      $region52: #{tpu_custom_call.1} parent=5 // pred_fallthru
        _
    $region6: #{tpu_custom_call.1} parent=1 // loop_footer
      %s22 = sadd.s32 1, %s18
    $region7: #{tpu_custom_call.1} parent=1 // loop_footer_branch
      %17 = sbr.rel target = $region3
    $region8: #{tpu_custom_call.1} parent=1 // loop_exit
      _
    %438 = vsyncpa [#allocation3], 1
    %s439 = scalar_lea.sflag [#allocation3], 1
    %440 = vsyncpa %s439, 1
    %441 = vsyncpa [#allocation6], 1
    %s442 = scalar_lea.sflag [#allocation6], 1
    %443 = vsyncpa %s442, 1
    %444 = vsyncpa [#allocation4], 1
    %s445 = scalar_lea.sflag [#allocation4], 1
    %446 = vsyncpa %s445, 1

</llo_original>
